<compile_context>
chip_gen: v7x
topology: tpu7x:2x2x1
jax: 0.10.0
libtpu: 0.0.40
codegen_flags: <defaults>
</compile_context>

<pallas_src>
import jax
import jax.numpy as jnp
from jax.experimental import pallas as pl
from jax.experimental.pallas import tpu as pltpu

# Exact constants hard-coded by ConvTestModel (oc, [k00, k01, k10, k11]) + bias.
_W = ((0.1, -2.0, 1.0, 0.1),
      (0.1, 2.0, -1.0, 0.1))
_B = (0.1, 1.0)


def conv2x2_kernel(x_ref, out_ref):
    # x_ref:   (4, 4) f32 in VMEM   -- the single input channel
    # out_ref: (6, 3) f32 in VMEM   -- [ch0 rows 0..2 ; ch1 rows 0..2]
    x = x_ref[...]                       # one vreg-sized load

    # Four statically-shifted 2x2-tap windows of the valid 3x3 output grid.
    tl = x[:3, :3]                       # tap (0, 0)
    tr = x[:3, 1:]                       # tap (0, 1)
    bl = x[1:, :3]                       # tap (1, 0)
    br = x[1:, 1:]                       # tap (1, 1)

    ch0 = _W[0][0] * tl + _W[0][1] * tr + _W[0][2] * bl + _W[0][3] * br + _B[0]
    ch1 = _W[1][0] * tl + _W[1][1] * tr + _W[1][2] * bl + _W[1][3] * br + _B[1]

    # Single consolidated store: one output tile, one writeback DMA.
    out_ref[...] = jnp.concatenate([ch0, ch1], axis=0)


@jax.jit
def conv_forward(x):
    """x: (1, 1, 4, 4) f32 -> (1, 2, 3, 3) f32."""
    x2d = x.reshape(4, 4)                # contiguous reshape, no data movement

    out = pl.pallas_call(
        conv2x2_kernel,
        out_shape=jax.ShapeDtypeStruct((6, 3), jnp.float32),
        in_specs=[pl.BlockSpec(memory_space=pltpu.MemorySpace.VMEM)],
        out_specs=pl.BlockSpec(memory_space=pltpu.MemorySpace.VMEM),
    )(x2d)

    return out.reshape(1, 2, 3, 3)       # contiguous, free inside the jit


def reference_forward(x):
    # Pure-JAX mirror of the PyTorch module, for correctness checking.
    w = jnp.array(
        [[[[0.1, -2.0], [1.0, 0.1]]],
         [[[0.1, 2.0], [-1.0, 0.1]]]],
        dtype=jnp.float32,
    )
    bias = jnp.array([0.1, 1.0], dtype=jnp.float32)
    out = jax.lax.conv_general_dilated(
        x, w,
        window_strides=(1, 1),
        padding="VALID",
        dimension_numbers=("NCHW", "OIHW", "NCHW"),
        precision=jax.lax.Precision.HIGHEST,
    )
    return out + bias.reshape(1, 2, 1, 1)


if __name__ == "__main__":
    key = jax.random.PRNGKey(0)
    x = jax.random.normal(key, (1, 1, 4, 4), dtype=jnp.float32)   # module INPUT_SIZE

    out = jax.block_until_ready(conv_forward(x))
    ref = reference_forward(x)

    assert out.shape == (1, 2, 3, 3), out.shape
    assert jnp.allclose(out, ref, rtol=1e-5, atol=1e-5), (out, ref)
    print("KERNEL_OK")
</pallas_src>

<mosaic_0001>
module attributes {stable_mosaic.version = 11 : i64} {
  func.func @conv2x2_kernel(%arg0: memref<4x4xf32, #tpu.memory_space<vmem>>, %arg1: memref<6x3xf32, #tpu.memory_space<vmem>>) attributes {dimension_semantics = [], scalar_prefetch = 0 : i64, scratch_operands = 0 : i64, tpu.core_type = #tpu.core_type<tc>} {
    %c0 = arith.constant 0 : index
    %c0_0 = arith.constant 0 : index
    %0 = vector.load %arg0[%c0, %c0_0] : memref<4x4xf32, #tpu.memory_space<vmem>>, vector<4x4xf32>
    %1 = vector.extract_strided_slice %0 {offsets = [0, 0], sizes = [3, 3], strides = [1, 1]} : vector<4x4xf32> to vector<3x3xf32>
    %2 = vector.extract_strided_slice %0 {offsets = [0, 1], sizes = [3, 3], strides = [1, 1]} : vector<4x4xf32> to vector<3x3xf32>
    %3 = vector.extract_strided_slice %0 {offsets = [1, 0], sizes = [3, 3], strides = [1, 1]} : vector<4x4xf32> to vector<3x3xf32>
    %4 = vector.extract_strided_slice %0 {offsets = [1, 1], sizes = [3, 3], strides = [1, 1]} : vector<4x4xf32> to vector<3x3xf32>
    %cst = arith.constant 1.000000e-01 : f32
    %5 = vector.broadcast %cst : f32 to vector<3x3xf32>
    %6 = arith.mulf %5, %1 : vector<3x3xf32>
    %cst_1 = arith.constant -2.000000e+00 : f32
    %7 = vector.broadcast %cst_1 : f32 to vector<3x3xf32>
    %8 = arith.mulf %7, %2 : vector<3x3xf32>
    %9 = arith.addf %6, %8 : vector<3x3xf32>
    %cst_2 = arith.constant 1.000000e+00 : f32
    %10 = vector.broadcast %cst_2 : f32 to vector<3x3xf32>
    %11 = arith.mulf %10, %3 : vector<3x3xf32>
    %12 = arith.addf %9, %11 : vector<3x3xf32>
    %cst_3 = arith.constant 1.000000e-01 : f32
    %13 = vector.broadcast %cst_3 : f32 to vector<3x3xf32>
    %14 = arith.mulf %13, %4 : vector<3x3xf32>
    %15 = arith.addf %12, %14 : vector<3x3xf32>
    %cst_4 = arith.constant 1.000000e-01 : f32
    %16 = vector.broadcast %cst_4 : f32 to vector<3x3xf32>
    %17 = arith.addf %15, %16 : vector<3x3xf32>
    %cst_5 = arith.constant 1.000000e-01 : f32
    %18 = vector.broadcast %cst_5 : f32 to vector<3x3xf32>
    %19 = arith.mulf %18, %1 : vector<3x3xf32>
    %cst_6 = arith.constant 2.000000e+00 : f32
    %20 = vector.broadcast %cst_6 : f32 to vector<3x3xf32>
    %21 = arith.mulf %20, %2 : vector<3x3xf32>
    %22 = arith.addf %19, %21 : vector<3x3xf32>
    %cst_7 = arith.constant -1.000000e+00 : f32
    %23 = vector.broadcast %cst_7 : f32 to vector<3x3xf32>
    %24 = arith.mulf %23, %3 : vector<3x3xf32>
    %25 = arith.addf %22, %24 : vector<3x3xf32>
    %cst_8 = arith.constant 1.000000e-01 : f32
    %26 = vector.broadcast %cst_8 : f32 to vector<3x3xf32>
    %27 = arith.mulf %26, %4 : vector<3x3xf32>
    %28 = arith.addf %25, %27 : vector<3x3xf32>
    %cst_9 = arith.constant 1.000000e+00 : f32
    %29 = vector.broadcast %cst_9 : f32 to vector<3x3xf32>
    %30 = arith.addf %28, %29 : vector<3x3xf32>
    %31 = tpu.concatenate %17, %30 in 0 : vector<3x3xf32>, vector<3x3xf32> -> vector<6x3xf32>
    %c0_10 = arith.constant 0 : index
    %c0_11 = arith.constant 0 : index
    %32 = vector.load %arg1[%c0_10, %c0_11] : memref<6x3xf32, #tpu.memory_space<vmem>>, vector<6x3xf32>
    tpu.vector_store %arg1[%c0_10, %c0_11], %31 {strides = array<i32>} : memref<6x3xf32, #tpu.memory_space<vmem>>, vector<6x3xf32>,
    return
  }
}

</mosaic_0001>

<llo_original>
// kernel: conv_forward.1
$region0: #{conv_forward.1}
  #allocation0 [shape = 'u32[]', space=smem, size = 0x4, offset = 0x4, fixed_abs, tag = 'smem constant byte address 0x4 - core index']
  #allocation1 [shape = 'u32[144,128]{1,0:T(1,128)}', space=vmem, size = 0x12000, scoped, tag = 'internal scratch']
  %s0 = inlined_call_operand.hbm [shape: f32[4,4], index: 0, kind: input, shape index: {}]
  %s1 = inlined_call_operand.vmem [shape: f32[6,3], index: 1, kind: output, shape index: {}]
  %s2 = sld [smem:[#allocation0]]
  $region18: #{conv_forward.1} parent=0
    _
  %s4 = ssub.s32 1, %s2
  %s5 = scalar_select 0, %s4, %s2
  $region1: #{conv_forward.1} parent=0
    #allocation2 [shape = 'u8[2048]{0}', space=vmem, size = 0x800, scoped, tag = 'input window, operand 0, single buffered']
    #allocation3 [shape = 's32[1]{0}', space=sflag, size = 0x4, scoped, tag = 'scoped memory for conv_forward.1']
    %6 = vsyncpa [#allocation3], 0
    // Predicated region
    $region2: #{conv_forward.1} parent=1 // pred_check
      _
    $region3: #{conv_forward.1} parent=1 // pred_check_branch
      %8 = sbr.rel (0) target = $region5
    $region4: #{conv_forward.1} parent=1 // pred_region
      %s10 = ssub.s32 64, 64
      %11 = vsyncadd [#allocation3], %s10
      %s13 = sshll.u32 [#allocation2], 4
      %s14 = int_to_ptr.vmem [resolvable:$true] %s13
      %16 = dma.hbm_to_vmem [thread:$0]  %s0, 64, %s14, [#allocation3]
    $region5: #{conv_forward.1} parent=1 // pred_fallthru
      _
    // Predicated region
    $region6: #{conv_forward.1} parent=1 // pred_check
      _
    $region7: #{conv_forward.1} parent=1 // pred_check_branch
      %18 = sbr.rel (0) target = $region9
    $region8: #{conv_forward.1} parent=1 // pred_region
      %19 = dma.done [#allocation3], 64
    $region9: #{conv_forward.1} parent=1 // pred_fallthru
      _
    %v20 = vld [vmem:[#allocation2] sm:$0xf]
    %v21 = vmul.f32 %v20, 0.1
    %v22 = vmul.f32 %v20, -2.0
    %24 = vrot.lane.b32.xlu0 %v22, 127
    %v25 = vpop.permute.xlu0 %24
    %v27 = vadd.f32 %v21, %v25
    %v29 = vrot.slane %v20, 1
    %v31 = vadd.f32 %v27, %v29
    %v33 = vrot.slane %v21, 1
    %34 = vrot.lane.b32.xlu0 %v33, 127
    %v35 = vpop.permute.xlu0 %34
    %v37 = vadd.f32 %v31, %v35
    %v38 = vadd.f32 %v37, 0.1
    %v39 = vmul.f32 %v20, 2.0
    %41 = vrot.lane.b32.xlu0 %v39, 127
    %v42 = vpop.permute.xlu0 %41
    %v44 = vadd.f32 %v21, %v42
    %v45 = vmul.f32 %v20, -1.0
    %v47 = vrot.slane %v45, 1
    %v49 = vadd.f32 %v44, %v47
    %v50 = vadd.f32 %v49, %v35
    %v51 = vadd.f32 %v50, 1.0
    %v53 = vrot.slane %v51, 5
    %vm55 = vcmask 1042432
    %v56 = vsel %vm55, %v38, %v53
    %vm57 = vcmask 21504
    %58 = vst.msk [vmem:[%s1] sm:$0x3f] %vm57, %v56
    // Predicated region
    $region10: #{conv_forward.1} parent=1 // pred_check
      _
    $region11: #{conv_forward.1} parent=1 // pred_check_branch
      %60 = sbr.rel (0) target = $region13
    $region12: #{conv_forward.1} parent=1 // pred_region
      _
    $region13: #{conv_forward.1} parent=1 // pred_fallthru
      _
    // Predicated region
    $region14: #{conv_forward.1} parent=1 // pred_check
      _
    $region15: #{conv_forward.1} parent=1 // pred_check_branch
      %62 = sbr.rel (0) target = $region17
    $region16: #{conv_forward.1} parent=1 // pred_region
      _
    $region17: #{conv_forward.1} parent=1 // pred_fallthru
      _
    %63 = vsyncpa [#allocation3], 1

</llo_original>
